<compile_context>
chip_gen: v7x
topology: tpu7x:2x2x1
jax: 0.10.0
libtpu: 0.0.40
codegen_flags: <defaults>
</compile_context>

<pallas_src>
import functools

import jax
import jax.numpy as jnp
from jax.experimental import pallas as pl
from jax.experimental.pallas import tpu as pltpu


def _focal_kernel(preds_ref, labels_ref, alpha_ref, out_ref, *, gamma,
                  num_classes):
    t = pl.program_id(1)

    # Output block index is constant across the inner (reduction) axis
    # -> resident lane-wide accumulator; zero it on the first step.
    @pl.when(t == 0)
    def _():
        out_ref[...] = jnp.zeros_like(out_ref)

    C = num_classes
    x = preds_ref[...].astype(jnp.float32)       # (C, TN)  classes on sublanes
    labels = labels_ref[...]                     # (1, TN)  int32
    alpha = alpha_ref[...]                       # (C, 1)   f32 (pre-cast)

    # Per-sample log-sum-exp over the class axis, unrolled over C so the
    # reduction stays a handful of VPU maxes/adds (no XLU reduce per tile).
    m = x[0:1, :]
    for c in range(1, C):
        m = jnp.maximum(m, x[c:c + 1, :])
    s = jnp.exp(x[0:1, :] - m)
    for c in range(1, C):
        s = s + jnp.exp(x[c:c + 1, :] - m)
    lse = m + jnp.log(s)                         # (1, TN)

    # Gather log p_t and alpha_t at the label via lane-wide selects.
    # Out-of-range labels (incl. the -1 padding rows) select nothing ->
    # logpt = 0, alpha_t = 0 -> exactly zero loss contribution.
    logpt = jnp.zeros_like(lse)
    alpha_t = jnp.zeros_like(lse)
    for c in range(C):
        sel = labels == c
        logpt = jnp.where(sel, x[c:c + 1, :] - lse, logpt)
        alpha_t = jnp.where(sel, alpha[c:c + 1, :], alpha_t)

    pt = jnp.exp(logpt)
    one_minus_pt = 1.0 - pt

    g = float(gamma)
    if g == int(g) and 0 <= int(g) <= 8:
        # Integer gamma: multiply chain on the 4-wide VALU (gamma=2 -> square),
        # instead of pow -> log+exp on the single EUP slot.
        focal = jnp.ones_like(one_minus_pt)
        for _ in range(int(g)):
            focal = focal * one_minus_pt
    else:
        focal = jnp.power(one_minus_pt, jnp.float32(g))

    loss = -alpha_t * focal * logpt              # (1, TN)

    # Lane-wide vector accumulation; the single cross-lane reduce happens once
    # in the wrapper (jnp.sum over the tiny (num_parallel*8, TN) output).
    out_ref[0:1, :] += loss


def focal_loss(preds, labels, alpha_vec, *, gamma=2.0, size_average=True,
               tile_lanes=2048, num_parallel=2):
    """preds: [B, N, C] or [B, C] float; labels: [B, N] or [B] int; alpha_vec: [C]."""
    C = preds.shape[-1]
    # Keep preds in their original dtype (e.g. bf16) -> the kernel DMAs the
    # narrow dtype from HBM and upcasts to f32 in-register after the load.
    preds2d = preds.reshape(-1, C)
    labels1d = labels.reshape(-1).astype(jnp.int32)
    M = preds2d.shape[0]

    # Rows-on-lanes layout: classes on sublanes, samples on the lane axis.
    preds_t = preds2d.T                          # (C, M)
    labels2d = labels1d.reshape(1, M)            # (1, M)

    # Lane tile: as large as useful (amortize ~0.35us/step), multiple of 128.
    TN = max(128, min(int(tile_lanes), pl.cdiv(M, 128) * 128))
    chunk = num_parallel * TN
    M_pad = pl.cdiv(M, chunk) * chunk
    if M_pad != M:
        preds_t = jnp.pad(preds_t, ((0, 0), (0, M_pad - M)))
        labels2d = jnp.pad(labels2d, ((0, 0), (0, M_pad - M)),
                           constant_values=-1)   # padded rows -> zero loss
    tiles_per_par = M_pad // chunk

    alpha2d = alpha_vec.reshape(C, 1).astype(jnp.float32)

    # TODO(synk): if DMA is still exposed for very large M, add
    # pipeline_mode=pl.Buffered(3) on the preds/labels BlockSpecs.
    out = pl.pallas_call(
        functools.partial(_focal_kernel, gamma=gamma, num_classes=C),
        out_shape=jax.ShapeDtypeStruct((num_parallel * 8, TN), jnp.float32),
        grid_spec=pltpu.PrefetchScalarGridSpec(
            num_scalar_prefetch=0,
            grid=(num_parallel, tiles_per_par),
            in_specs=[
                # preds (C, M_pad): classes whole, TN samples per step
                pl.BlockSpec((C, TN), lambda p, t: (0, p * tiles_per_par + t)),
                # labels (1, M_pad)
                pl.BlockSpec((1, TN), lambda p, t: (0, p * tiles_per_par + t)),
                # alpha (C, 1): constant block, no re-DMA across steps
                pl.BlockSpec((C, 1), lambda p, t: (0, 0)),
            ],
            # Per-parallel-chunk lane-wide partial sums (v7x: one per core).
            out_specs=pl.BlockSpec((8, TN), lambda p, t: (p, 0)),
        ),
        compiler_params=pltpu.CompilerParams(
            dimension_semantics=("parallel", "arbitrary")),
    )(preds_t, labels2d, alpha2d)

    total = jnp.sum(out)
    if size_average:
        return total / jnp.float32(M)
    return total


def _reference_focal_loss(preds, labels, alpha_vec, gamma=2.0,
                          size_average=True):
    C = preds.shape[-1]
    p = preds.reshape(-1, C).astype(jnp.float32)
    lab = labels.reshape(-1).astype(jnp.int32)
    logsoft = jax.nn.log_softmax(p, axis=1)
    logpt = jnp.take_along_axis(logsoft, lab[:, None], axis=1)[:, 0]
    pt = jnp.exp(logpt)
    a = alpha_vec[lab]
    loss = -a * jnp.power(1.0 - pt, gamma) * logpt
    return loss.mean() if size_average else loss.sum()


if __name__ == "__main__":
    # Module config: alpha=0.25 scalar, gamma=2, num_classes=4, size_average=True
    num_classes = 4
    alpha_scalar = 0.25
    gamma = 2.0
    # alpha vector per __init__: [alpha, 1-alpha, 1-alpha, ...]
    alpha_vec = jnp.concatenate(
        [jnp.array([alpha_scalar], jnp.float32),
         jnp.full((num_classes - 1,), 1.0 - alpha_scalar, jnp.float32)])

    key = jax.random.PRNGKey(0)

    # Case 1: preds [B, N, C], labels [B, N]
    B, N, C = 2, 8, num_classes
    kp, kl, key = jax.random.split(key, 3)
    preds = jax.random.normal(kp, (B, N, C), dtype=jnp.float32)
    labels = jax.random.randint(kl, (B, N), 0, C, dtype=jnp.int32)

    out = focal_loss(preds, labels, alpha_vec, gamma=gamma, size_average=True)
    out = jax.block_until_ready(out)
    ref = _reference_focal_loss(preds, labels, alpha_vec, gamma=gamma,
                                size_average=True)
    assert jnp.allclose(out, ref, rtol=1e-5, atol=1e-6), (out, ref)

    # Case 2: ragged row count (exercises the padding path), sum reduction.
    B2, N2 = 3, 37
    kp2, kl2 = jax.random.split(key)
    preds2 = jax.random.normal(kp2, (B2, N2, C), dtype=jnp.float32)
    labels2 = jax.random.randint(kl2, (B2, N2), 0, C, dtype=jnp.int32)

    out2 = focal_loss(preds2, labels2, alpha_vec, gamma=gamma,
                      size_average=False)
    out2 = jax.block_until_ready(out2)
    ref2 = _reference_focal_loss(preds2, labels2, alpha_vec, gamma=gamma,
                                 size_average=False)
    assert jnp.allclose(out2, ref2, rtol=1e-5, atol=1e-5), (out2, ref2)

    print("KERNEL_OK")
</pallas_src>

<mosaic_0001>
module attributes {stable_mosaic.version = 11 : i64} {
  func.func @_focal_kernel(%arg0: i32, %arg1: i32, %arg2: memref<4x128xf32, #tpu.memory_space<vmem>>, %arg3: memref<1x128xi32, #tpu.memory_space<vmem>>, %arg4: memref<4x1xf32, #tpu.memory_space<vmem>>, %arg5: memref<8x128xf32, #tpu.memory_space<vmem>>) attributes {dimension_semantics = [#tpu.dimension_semantics<parallel>, #tpu.dimension_semantics<arbitrary>], iteration_bounds = array<i64: 2, 1>, scalar_prefetch = 0 : i64, scratch_operands = 0 : i64, tpu.core_type = #tpu.core_type<tc>, window_params = [{transform_indices = @transform_0, window_bounds = array<i64: 4, 128>}, {transform_indices = @transform_1, window_bounds = array<i64: 1, 128>}, {pipeline_mode = #tpu.pipeline_mode<synchronous>, transform_indices = @transform_2, window_bounds = array<i64: 4, 1>}, {transform_indices = @transform_3, window_bounds = array<i64: 8, 128>}]} {
    %c0_i32 = arith.constant 0 : i32
    %0 = arith.cmpi eq, %arg1, %c0_i32 : i32
    %1 = arith.extui %0 : i1 to i32
    %c0_i32_0 = arith.constant 0 : i32
    %2 = arith.cmpi ne, %1, %c0_i32_0 : i32
    scf.if %2 {
      %cst_15 = arith.constant 0.000000e+00 : f32
      %81 = vector.broadcast %cst_15 : f32 to vector<8x128xf32>
      %c0_16 = arith.constant 0 : index
      %c0_17 = arith.constant 0 : index
      %82 = vector.load %arg5[%c0_16, %c0_17] : memref<8x128xf32, #tpu.memory_space<vmem>>, vector<8x128xf32>
      tpu.vector_store %arg5[%c0_16, %c0_17], %81 {strides = array<i32>} : memref<8x128xf32, #tpu.memory_space<vmem>>, vector<8x128xf32>,
    } else {
    }
    %c0 = arith.constant 0 : index
    %c0_1 = arith.constant 0 : index
    %3 = vector.load %arg2[%c0, %c0_1] : memref<4x128xf32, #tpu.memory_space<vmem>>, vector<4x128xf32>
    %c0_2 = arith.constant 0 : index
    %c0_3 = arith.constant 0 : index
    %4 = vector.load %arg3[%c0_2, %c0_3] : memref<1x128xi32, #tpu.memory_space<vmem>>, vector<1x128xi32>
    %c0_4 = arith.constant 0 : index
    %c0_5 = arith.constant 0 : index
    %5 = vector.load %arg4[%c0_4, %c0_5] : memref<4x1xf32, #tpu.memory_space<vmem>>, vector<4x1xf32>
    %6 = vector.extract_strided_slice %3 {offsets = [0, 0], sizes = [1, 128], strides = [1, 1]} : vector<4x128xf32> to vector<1x128xf32>
    %7 = vector.extract_strided_slice %3 {offsets = [1, 0], sizes = [1, 128], strides = [1, 1]} : vector<4x128xf32> to vector<1x128xf32>
    %8 = arith.maximumf %6, %7 : vector<1x128xf32>
    %9 = vector.extract_strided_slice %3 {offsets = [2, 0], sizes = [1, 128], strides = [1, 1]} : vector<4x128xf32> to vector<1x128xf32>
    %10 = arith.maximumf %8, %9 : vector<1x128xf32>
    %11 = vector.extract_strided_slice %3 {offsets = [3, 0], sizes = [1, 128], strides = [1, 1]} : vector<4x128xf32> to vector<1x128xf32>
    %12 = arith.maximumf %10, %11 : vector<1x128xf32>
    %13 = vector.extract_strided_slice %3 {offsets = [0, 0], sizes = [1, 128], strides = [1, 1]} : vector<4x128xf32> to vector<1x128xf32>
    %14 = arith.subf %13, %12 : vector<1x128xf32>
    %15 = math.exp %14 : vector<1x128xf32>
    %16 = vector.extract_strided_slice %3 {offsets = [1, 0], sizes = [1, 128], strides = [1, 1]} : vector<4x128xf32> to vector<1x128xf32>
    %17 = arith.subf %16, %12 : vector<1x128xf32>
    %18 = math.exp %17 : vector<1x128xf32>
    %19 = arith.addf %15, %18 : vector<1x128xf32>
    %20 = vector.extract_strided_slice %3 {offsets = [2, 0], sizes = [1, 128], strides = [1, 1]} : vector<4x128xf32> to vector<1x128xf32>
    %21 = arith.subf %20, %12 : vector<1x128xf32>
    %22 = math.exp %21 : vector<1x128xf32>
    %23 = arith.addf %19, %22 : vector<1x128xf32>
    %24 = vector.extract_strided_slice %3 {offsets = [3, 0], sizes = [1, 128], strides = [1, 1]} : vector<4x128xf32> to vector<1x128xf32>
    %25 = arith.subf %24, %12 : vector<1x128xf32>
    %26 = math.exp %25 : vector<1x128xf32>
    %27 = arith.addf %23, %26 : vector<1x128xf32>
    %28 = math.log %27 : vector<1x128xf32>
    %29 = arith.addf %12, %28 : vector<1x128xf32>
    %cst = arith.constant 0.000000e+00 : f32
    %30 = vector.broadcast %cst : f32 to vector<1x128xf32>
    %cst_6 = arith.constant 0.000000e+00 : f32
    %31 = vector.broadcast %cst_6 : f32 to vector<1x128xf32>
    %c0_i32_7 = arith.constant 0 : i32
    %32 = vector.broadcast %c0_i32_7 : i32 to vector<1x128xi32>
    %33 = arith.cmpi eq, %4, %32 : vector<1x128xi32>
    %34 = vector.extract_strided_slice %3 {offsets = [0, 0], sizes = [1, 128], strides = [1, 1]} : vector<4x128xf32> to vector<1x128xf32>
    %35 = arith.subf %34, %29 : vector<1x128xf32>
    %36 = arith.select %33, %35, %30 : vector<1x128xi1>, vector<1x128xf32>
    %37 = vector.extract_strided_slice %5 {offsets = [0, 0], sizes = [1, 1], strides = [1, 1]} : vector<4x1xf32> to vector<1x1xf32>
    %38 = vector.shape_cast %37 : vector<1x1xf32> to vector<1x1xf32>
    %39 = vector.broadcast %38 : vector<1x1xf32> to vector<1x128xf32>
    %40 = arith.select %33, %39, %31 : vector<1x128xi1>, vector<1x128xf32>
    %c1_i32 = arith.constant 1 : i32
    %41 = vector.broadcast %c1_i32 : i32 to vector<1x128xi32>
    %42 = arith.cmpi eq, %4, %41 : vector<1x128xi32>
    %43 = vector.extract_strided_slice %3 {offsets = [1, 0], sizes = [1, 128], strides = [1, 1]} : vector<4x128xf32> to vector<1x128xf32>
    %44 = arith.subf %43, %29 : vector<1x128xf32>
    %45 = arith.select %42, %44, %36 : vector<1x128xi1>, vector<1x128xf32>
    %46 = vector.extract_strided_slice %5 {offsets = [1, 0], sizes = [1, 1], strides = [1, 1]} : vector<4x1xf32> to vector<1x1xf32>
    %47 = vector.shape_cast %46 : vector<1x1xf32> to vector<1x1xf32>
    %48 = vector.broadcast %47 : vector<1x1xf32> to vector<1x128xf32>
    %49 = arith.select %42, %48, %40 : vector<1x128xi1>, vector<1x128xf32>
    %c2_i32 = arith.constant 2 : i32
    %50 = vector.broadcast %c2_i32 : i32 to vector<1x128xi32>
    %51 = arith.cmpi eq, %4, %50 : vector<1x128xi32>
    %52 = vector.extract_strided_slice %3 {offsets = [2, 0], sizes = [1, 128], strides = [1, 1]} : vector<4x128xf32> to vector<1x128xf32>
    %53 = arith.subf %52, %29 : vector<1x128xf32>
    %54 = arith.select %51, %53, %45 : vector<1x128xi1>, vector<1x128xf32>
    %55 = vector.extract_strided_slice %5 {offsets = [2, 0], sizes = [1, 1], strides = [1, 1]} : vector<4x1xf32> to vector<1x1xf32>
    %56 = vector.shape_cast %55 : vector<1x1xf32> to vector<1x1xf32>
    %57 = vector.broadcast %56 : vector<1x1xf32> to vector<1x128xf32>
    %58 = arith.select %51, %57, %49 : vector<1x128xi1>, vector<1x128xf32>
    %c3_i32 = arith.constant 3 : i32
    %59 = vector.broadcast %c3_i32 : i32 to vector<1x128xi32>
    %60 = arith.cmpi eq, %4, %59 : vector<1x128xi32>
    %61 = vector.extract_strided_slice %3 {offsets = [3, 0], sizes = [1, 128], strides = [1, 1]} : vector<4x128xf32> to vector<1x128xf32>
    %62 = arith.subf %61, %29 : vector<1x128xf32>
    %63 = arith.select %60, %62, %54 : vector<1x128xi1>, vector<1x128xf32>
    %64 = vector.extract_strided_slice %5 {offsets = [3, 0], sizes = [1, 1], strides = [1, 1]} : vector<4x1xf32> to vector<1x1xf32>
    %65 = vector.shape_cast %64 : vector<1x1xf32> to vector<1x1xf32>
    %66 = vector.broadcast %65 : vector<1x1xf32> to vector<1x128xf32>
    %67 = arith.select %60, %66, %58 : vector<1x128xi1>, vector<1x128xf32>
    %68 = math.exp %63 : vector<1x128xf32>
    %cst_8 = arith.constant 1.000000e+00 : f32
    %69 = vector.broadcast %cst_8 : f32 to vector<1x128xf32>
    %70 = arith.subf %69, %68 : vector<1x128xf32>
    %cst_9 = arith.constant 1.000000e+00 : f32
    %71 = vector.broadcast %cst_9 : f32 to vector<1x128xf32>
    %72 = arith.mulf %71, %70 : vector<1x128xf32>
    %73 = arith.mulf %72, %70 : vector<1x128xf32>
    %cst_10 = arith.constant 0.000000e+00 : f32
    %74 = vector.broadcast %cst_10 : f32 to vector<1x128xf32>
    %75 = arith.subf %74, %67 : vector<1x128xf32>
    %76 = arith.mulf %75, %73 : vector<1x128xf32>
    %77 = arith.mulf %76, %63 : vector<1x128xf32>
    %c0_11 = arith.constant 0 : index
    %c0_12 = arith.constant 0 : index
    %78 = vector.load %arg5[%c0_11, %c0_12] : memref<8x128xf32, #tpu.memory_space<vmem>>, vector<1x128xf32>
    %79 = arith.addf %78, %77 : vector<1x128xf32>
    %c0_13 = arith.constant 0 : index
    %c0_14 = arith.constant 0 : index
    %80 = vector.load %arg5[%c0_13, %c0_14] : memref<8x128xf32, #tpu.memory_space<vmem>>, vector<1x128xf32>
    tpu.vector_store %arg5[%c0_13, %c0_14], %79 {strides = array<i32>} : memref<8x128xf32, #tpu.memory_space<vmem>>, vector<1x128xf32>,
    return
  }
  func.func @transform_0(%arg0: i32, %arg1: i32) -> (i32, i32) {
    %c1_i32 = arith.constant 1 : i32
    %0 = arith.muli %arg0, %c1_i32 : i32
    %1 = arith.addi %0, %arg1 : i32
    %c0_i32 = arith.constant 0 : i32
    %c0_i32_0 = arith.constant 0 : i32
    return %c0_i32, %1 : i32, i32
  }
  func.func @transform_1(%arg0: i32, %arg1: i32) -> (i32, i32) {
    %c1_i32 = arith.constant 1 : i32
    %0 = arith.muli %arg0, %c1_i32 : i32
    %1 = arith.addi %0, %arg1 : i32
    %c0_i32 = arith.constant 0 : i32
    %c0_i32_0 = arith.constant 0 : i32
    return %c0_i32, %1 : i32, i32
  }
  func.func @transform_2(%arg0: i32, %arg1: i32) -> (i32, i32) {
    %c0_i32 = arith.constant 0 : i32
    %c0_i32_0 = arith.constant 0 : i32
    %c0_i32_1 = arith.constant 0 : i32
    return %c0_i32, %c0_i32_0 : i32, i32
  }
  func.func @transform_3(%arg0: i32, %arg1: i32) -> (i32, i32) {
    %c0_i32 = arith.constant 0 : i32
    %c0_i32_0 = arith.constant 0 : i32
    return %arg0, %c0_i32 : i32, i32
  }
}

</mosaic_0001>

<llo_original>
// kernel: tpu_custom_call.1
$region0: #{tpu_custom_call.1}
  #allocation0 [shape = 'u32[]', space=smem, size = 0x4, offset = 0x4, fixed_abs, tag = 'smem constant byte address 0x4 - core index']
  #allocation1 [shape = 'u32[144,128]{1,0:T(1,128)}', space=vmem, size = 0x12000, scoped, tag = 'internal scratch']
  %s0 = inlined_call_operand.hbm [shape: f32[4,256], index: 0, kind: input, shape index: {}]
  %s1 = inlined_call_operand.vmem [shape: s32[1,256], index: 1, kind: input, shape index: {}]
  %s2 = inlined_call_operand.vmem [shape: f32[4,1], index: 2, kind: input, shape index: {}]
  %s3 = inlined_call_operand.hbm [shape: f32[16,128], index: 3, kind: output, shape index: {}]
  %s4 = sld [smem:[#allocation0]]
  $region53: #{tpu_custom_call.1} parent=0
    _
  %s6 = ssub.s32 1, %s4
  %s7 = scalar_select 0, %s6, %s4
  $region1: #{tpu_custom_call.1} parent=0
    #allocation2 [shape = 'u8[4096]{0}', space=vmem, size = 0x1000, scoped, tag = 'input window, operand 0']
    #allocation3 [shape = 's32[2]{0}', space=sflag, size = 0x8, scoped, tag = 'scoped memory for tpu_custom_call.1']
    #allocation4 [shape = 's32[2]{0}', space=sflag, size = 0x8, scoped, tag = 'scoped memory for tpu_custom_call.1']
    #allocation5 [shape = 'u8[8192]{0}', space=vmem, size = 0x2000, scoped, tag = 'output window, operand 0']
    %8 = vsyncpa [#allocation3], 0
    %s9 = scalar_lea.sflag [#allocation3], 1
    %10 = vsyncpa %s9, 0
    %11 = vsyncpa [#allocation4], 0
    %s12 = scalar_lea.sflag [#allocation4], 1
    %13 = vsyncpa %s12, 0
    loop: start=0, step=1, limit=4
    $region2: #{tpu_custom_call.1} parent=1 // loop_pre_header
      _
    $region3: #{tpu_custom_call.1} parent=1 // loop_header
      %s15 = sphi 0, %s19
      %p16 = scmp.ge.s32.totalorder %s15, 4
      %s22 = sphi 0, %s34
      %s23 = sphi 0, %s30
      %s24 = sphi 0, %s22
      %s25 = sphi 0, %s23
      %s26 = sphi 0, %s24
      %s27 = sphi 0, %s25
      %s39 = sphi 0, %s41
      %s42 = sphi 0, %s39
      %s43 = sphi 0, %s42
      %s59 = sphi 0, %s43
      %s67 = sphi 0, %s69
      %s70 = sphi 0, %s67
      %s71 = sphi 0, %s70
      %s87 = sphi 0, %s71
      %s91 = sphi 0, %s91
      %s93 = sphi 0, %s91
      %s94 = sphi 0, %s93
      %s108 = sphi 0, %s94
      %s114 = sphi 0, %s116
      %s117 = sphi 0, %s114
      %s118 = sphi 0, %s117
      %s134 = sphi 0, %s118
    $region4: #{tpu_custom_call.1} parent=1 // loop_header_branch
      %18 = sbr.rel (%p16) target = $region8
    $region5: #{tpu_custom_call.1} parent=1 // loop_body
      %s20 = ssub.s32 %s15, 1
      %s21 = ssub.s32 %s15, 2
      %s28 = sadd.s32 1, %s23
      %p29 = scmp.ge.s32.totalorder %s28, 1
      %s30 = scalar_select %p29, 0, %s28
      %s31 = sadd.s32 1, %s22
      %s32 = scalar_select %p29, %s31, %s22
      %p33 = scmp.ge.s32.totalorder %s32, 2
      %s34 = scalar_select %p33, 0, %s32
      %s35 = sadd.s32 %s22, %s23
      %s36 = sadd.s32 %s34, %s30
      %s37 = ssub.s32 %s35, %s36
      %p38 = scmp.eq.s32.totalorder %s37, 0
      %s40 = sadd.s32 %s39, 1
      %s41 = scalar_select %p38, %s39, %s40
      %p44 = pneg %p38
      %p45 = scmp.eq.s32.totalorder %s15, 1
      %p46 = por %p44, %p45
      %p47 = scmp.ne.s32.totalorder %s39, %s42
      %p48 = scmp.eq.s32.totalorder %s15, 0
      %p49 = por %p47, %p48
      %p50 = scmp.ne.s32.totalorder %s39, %s42
      %p51 = scmp.eq.s32.totalorder %s20, 1
      %p52 = por %p50, %p51
      %p53 = scmp.ne.s32.totalorder %s42, %s43
      %p54 = scmp.eq.s32.totalorder %s20, 0
      %p55 = por %p53, %p54
      %p56 = scmp.ne.s32.totalorder %s42, %s43
      %p57 = scmp.eq.s32.totalorder %s21, 1
      %p58 = por %p56, %p57
      %p60 = scmp.ne.s32.totalorder %s43, %s59
      %p61 = scmp.eq.s32.totalorder %s21, 0
      %p62 = por %p60, %p61
      %s63 = sadd.s32 %s22, %s23
      %s64 = sadd.s32 %s34, %s30
      %s65 = ssub.s32 %s63, %s64
      %p66 = scmp.eq.s32.totalorder %s65, 0
      %s68 = sadd.s32 %s67, 1
      %s69 = scalar_select %p66, %s67, %s68
      %p72 = pneg %p66
      %p73 = scmp.eq.s32.totalorder %s15, 1
      %p74 = por %p72, %p73
      %p75 = scmp.ne.s32.totalorder %s67, %s70
      %p76 = scmp.eq.s32.totalorder %s15, 0
      %p77 = por %p75, %p76
      %p78 = scmp.ne.s32.totalorder %s67, %s70
      %p79 = scmp.eq.s32.totalorder %s20, 1
      %p80 = por %p78, %p79
      %p81 = scmp.ne.s32.totalorder %s70, %s71
      %p82 = scmp.eq.s32.totalorder %s20, 0
      %p83 = por %p81, %p82
      %p84 = scmp.ne.s32.totalorder %s70, %s71
      %p85 = scmp.eq.s32.totalorder %s21, 1
      %p86 = por %p84, %p85
      %p88 = scmp.ne.s32.totalorder %s71, %s87
      %p89 = scmp.eq.s32.totalorder %s21, 0
      %p90 = por %p88, %p89
      %s92 = sadd.s32 %s91, 1
      %p95 = scmp.eq.s32.totalorder %s15, 1
      %p96 = scmp.ne.s32.totalorder %s91, %s93
      %p97 = scmp.eq.s32.totalorder %s15, 0
      %p98 = por %p96, %p97
      %p99 = scmp.ne.s32.totalorder %s91, %s93
      %p100 = scmp.eq.s32.totalorder %s20, 1
      %p101 = por %p99, %p100
      %p102 = scmp.ne.s32.totalorder %s93, %s94
      %p103 = scmp.eq.s32.totalorder %s20, 0
      %p104 = por %p102, %p103
      %p105 = scmp.ne.s32.totalorder %s93, %s94
      %p106 = scmp.eq.s32.totalorder %s21, 1
      %p107 = por %p105, %p106
      %p109 = scmp.ne.s32.totalorder %s94, %s108
      %p110 = scmp.eq.s32.totalorder %s21, 0
      %p111 = por %p109, %p110
      %s112 = ssub.s32 %s22, %s34
      %p113 = scmp.eq.s32.totalorder %s112, 0
      %s115 = sadd.s32 %s114, 1
      %s116 = scalar_select %p113, %s114, %s115
      %p119 = pneg %p113
      %p120 = scmp.eq.s32.totalorder %s15, 1
      %p121 = por %p119, %p120
      %p122 = scmp.ne.s32.totalorder %s114, %s117
      %p123 = scmp.eq.s32.totalorder %s15, 0
      %p124 = por %p122, %p123
      %p125 = scmp.ne.s32.totalorder %s114, %s117
      %p126 = scmp.eq.s32.totalorder %s20, 1
      %p127 = por %p125, %p126
      %p128 = scmp.ne.s32.totalorder %s117, %s118
      %p129 = scmp.eq.s32.totalorder %s20, 0
      %p130 = por %p128, %p129
      %p131 = scmp.ne.s32.totalorder %s117, %s118
      %p132 = scmp.eq.s32.totalorder %s21, 1
      %p133 = por %p131, %p132
      %p135 = scmp.ne.s32.totalorder %s118, %s134
      %p136 = scmp.eq.s32.totalorder %s21, 0
      %p137 = por %p135, %p136
      %p138 = scmp.le.s32.totalorder 1, %s15
      %p139 = scmp.lt.s32.totalorder %s15, 3
      %p140 = pnand %p138, %p139
      %p141 = pneg %p140
      // Predicated region
      $region9: #{tpu_custom_call.1} parent=5 // pred_check
        _
      $region10: #{tpu_custom_call.1} parent=5 // pred_check_branch
        %143 = sbr.rel (%p140) target = $region12
      $region11: #{tpu_custom_call.1} parent=5 // pred_region
        %s144 = ssub.s32 %s15, 1
        // Predicated region
        $region13: #{tpu_custom_call.1} parent=11 // pred_check
          %p145 = pneg %p104
        $region14: #{tpu_custom_call.1} parent=11 // pred_check_branch
          %147 = sbr.rel (%p145) target = $region16
        $region15: #{tpu_custom_call.1} parent=11 // pred_region
          _
        $region16: #{tpu_custom_call.1} parent=11 // pred_fallthru
          _
      $region12: #{tpu_custom_call.1} parent=5 // pred_fallthru
        _
      %p148 = scmp.lt.s32.totalorder %s15, 2
      // Predicated region
      $region17: #{tpu_custom_call.1} parent=5 // pred_check
        %p149 = pneg %p148
      $region18: #{tpu_custom_call.1} parent=5 // pred_check_branch
        %151 = sbr.rel (%p149) target = $region20
      $region19: #{tpu_custom_call.1} parent=5 // pred_region
        // Predicated region
        $region21: #{tpu_custom_call.1} parent=19 // pred_check
          %p152 = pneg %p49
        $region22: #{tpu_custom_call.1} parent=19 // pred_check_branch
          %154 = sbr.rel (%p152) target = $region24
        $region23: #{tpu_custom_call.1} parent=19 // pred_region
          %s155 = sand.u32 %s39, 1
          %s156 = scalar_lea.sflag [#allocation3], %s155
          %s157 = sand.u32 %s39, 1
          %s158 = smul.addr %s157, 4
          %s159 = scalar_lea.vmem [#allocation2], %s158
          %s160 = sadd.s32 %s22, %s23
          %s162 = ssub.s32 64, 64
          %163 = vsyncadd %s156, %s162
          %s164 = smul.addr %s160, 64
          %s165 = scalar_lea.hbm %s0, %s164
          %s167 = sshll.u32 %s159, 4
          %s168 = int_to_ptr.vmem [resolvable:$true] %s167
          %170 = dma.hbm_to_vmem [thread:$0]  %s165, 64, %s168, %s156
        $region24: #{tpu_custom_call.1} parent=19 // pred_fallthru
          _
        // Predicated region
        $region25: #{tpu_custom_call.1} parent=19 // pred_check
          %p171 = pneg %p77
        $region26: #{tpu_custom_call.1} parent=19 // pred_check_branch
          %173 = sbr.rel (%p171) target = $region28
        $region27: #{tpu_custom_call.1} parent=19 // pred_region
          %s174 = sadd.s32 %s22, %s23
          %p175 = scmp.lt.s32.totalorder %s174, 1
          %s176 = scalar_select %p175, %s174, 1
          %s177 = scalar_lea.vmem %s1, %s176
          %s178 = sadd.s32 %s22, %s23
        $region28: #{tpu_custom_call.1} parent=19 // pred_fallthru
          _
      $region20: #{tpu_custom_call.1} parent=5 // pred_fallthru
        _
      %p179 = scmp.le.s32.totalorder 1, %s15
      %p180 = scmp.lt.s32.totalorder %s15, 3
      %p181 = pnand %p179, %p180
      %p182 = pneg %p181
      // Predicated region
      $region29: #{tpu_custom_call.1} parent=5 // pred_check
        _
      $region30: #{tpu_custom_call.1} parent=5 // pred_check_branch
        %184 = sbr.rel (%p181) target = $region32
      $region31: #{tpu_custom_call.1} parent=5 // pred_region
        %s185 = ssub.s32 %s15, 1
        %s186 = sand.u32 %s42, 1
        %s187 = scalar_lea.sflag [#allocation3], %s186
        %s188 = sand.u32 %s42, 1
        %s189 = smul.addr %s188, 4
        %s190 = scalar_lea.vmem [#allocation2], %s189
        // Predicated region
        $region33: #{tpu_custom_call.1} parent=31 // pred_check
          %p191 = pneg %p55
        $region34: #{tpu_custom_call.1} parent=31 // pred_check_branch
          %193 = sbr.rel (%p191) target = $region36
        $region35: #{tpu_custom_call.1} parent=31 // pred_region
          %194 = dma.done %s187, 64
        $region36: #{tpu_custom_call.1} parent=31 // pred_fallthru
          _
        %s195 = sand.u32 %s42, 1
        %s196 = scalar_lea.sflag [#allocation3], %s195
        %s197 = sand.u32 %s42, 1
        %s198 = smul.addr %s197, 4
        %s199 = scalar_lea.vmem [#allocation2], %s198
        %p200 = pneg %p55
        %p201 = pneg %p52
        %s202 = sadd.s32 %s24, %s25
        %p203 = scmp.lt.s32.totalorder %s202, 1
        %s204 = scalar_select %p203, %s202, 1
        %s205 = scalar_lea.vmem %s1, %s204
        %p206 = pneg %p83
        %p207 = pneg %p80
        %p208 = pneg %p104
        %p209 = pneg %p101
        %p210 = pneg %p130
        %p211 = pneg %p127
        %s212 = sand.u32 %s117, 1
        %s213 = scalar_lea.sflag [#allocation4], %s212
        %s214 = sand.u32 %s117, 1
        %s215 = smul.addr %s214, 8
        %s216 = scalar_lea.vmem [#allocation5], %s215
        %s217 = sadd.s32 %s24, %s25
        %s218 = sadd.s32 %s24, %s25
        %p219 = scmp.lt.s32.totalorder %s218, 1
        %s220 = scalar_select %p219, %s218, 1
        %s221 = scalar_lea.vmem %s1, %s220
        %s222 = sadd.s32 %s24, %s25
        %p223 = scmp.eq.s32.totalorder %s25, 0
        // Predicated region
        $region37: #{tpu_custom_call.1} parent=31 // pred_check
          %p224 = pneg %p223
        $region38: #{tpu_custom_call.1} parent=31 // pred_check_branch
          %226 = sbr.rel (%p224) target = $region40
        $region39: #{tpu_custom_call.1} parent=31 // pred_region
          %227 = vst [vmem:[%s216] sm:$0xff] 0.0
        $region40: #{tpu_custom_call.1} parent=31 // pred_fallthru
          _
        %v228 = vld [vmem:[%s190] sm:$0xf]
        %v229 = vld [vmem:[%s221] sm:$0x1]
        %v230 = vld [vmem:[%s2] sm:$0xf]
        %v232 = vrot.slane %v228, 1
        %v234 = vmax.f32 %v228, %v232
        %v235 = vrot.slane %v228, 2
        %v237 = vmax.f32 %v234, %v235
        %v238 = vrot.slane %v228, 3
        %v240 = vmax.f32 %v237, %v238
        %v241 = vsub.f32 %v228, %v240
        %v242 = vmul.f32 %v241, 1.442695
        %v243 = vpow.pop %v242
        %v245 = vrot.slane %v240, 7
        %v247 = vsub.f32 %v228, %v245
        %v248 = vmul.f32 %v247, 1.442695
        %v249 = vpow.pop %v248
        %v251 = vrot.slane %v249, 1
        %v253 = vadd.f32 %v243, %v251
        %v254 = vrot.slane %v240, 6
        %v256 = vsub.f32 %v228, %v254
        %v257 = vmul.f32 %v256, 1.442695
        %v258 = vpow.pop %v257
        %v260 = vrot.slane %v258, 2
        %v262 = vadd.f32 %v253, %v260
        %v263 = vrot.slane %v240, 5
        %v265 = vsub.f32 %v228, %v263
        %v266 = vmul.f32 %v265, 1.442695
        %v267 = vpow.pop %v266
        %v269 = vrot.slane %v267, 3
        %v271 = vadd.f32 %v262, %v269
        %v272 = vlog2.pop %v271
        %v273 = vmul.f32 %v272, 0.6931472
        %v274 = vadd.f32 %v240, %v273
        %vm275 = vcmp.eq.s32.totalorder %v229, 0
        %v276 = vsub.f32 %v228, %v274
        %v277 = vsel %vm275, %v276, 0.0
        %279 = vset.pattern.permute.xlu0 0
        %280 = vperm.xlu0 %279, %v230
        %v281 = vpop.permute.xlu0 %280
        %v283 = vsel %vm275, %v281, 0.0
        %vm284 = vcmp.eq.s32.totalorder %v229, 1
        %v286 = vrot.slane %v274, 7
        %v288 = vsub.f32 %v228, %v286
        %v291 = vunpack.c.l.s4 1966171168
        %v292 = vunpack.c.0.s8 %v291
        %v293 = vlaneseq
        %v294 = vshrl.u32 %v293, 7
        %v295 = vsub.s32 %v292, %v294
        %v296 = vrot.slane %v288, %v295
        %v297 = vcombine.high %v296, %v296
        %v299 = vunpack.c.l.s4 1966171168
        %v300 = vunpack.c.0.s8 %v299
        %v301 = vlaneseq
        %v302 = vshrl.u32 %v301, 7
        %v303 = vsub.s32 %v300, %v302
        %v304 = vrot.slane %v297, %v303
        %v306 = vsel %vm284, %v304, %v277
        %v307 = vlaneseq
        %v308 = vshrl.u32 %v307, 7
        %v309 = vsub.s32 1, %v308
        %v310 = vrot.slane %v281, %v309
        %v312 = vsel %vm284, %v310, %v283
        %vm313 = vcmp.eq.s32.totalorder %v229, 2
        %v314 = vrot.slane %v274, 6
        %v316 = vsub.f32 %v228, %v314
        %v319 = vunpack.c.l.s4 1966171168
        %v320 = vunpack.c.0.s8 %v319
        %v321 = vlaneseq
        %v322 = vshrl.u32 %v321, 7
        %v323 = vsub.s32 %v320, %v322
        %v324 = vrot.slane %v316, %v323
        %v326 = vunpack.c.l.s4 1966171168
        %v327 = vunpack.c.0.s8 %v326
        %v328 = vlaneseq
        %v329 = vshrl.u32 %v328, 7
        %v330 = vsub.s32 %v327, %v329
        %v331 = vrot.slane %v324, %v330
        %v332 = vcombine.high %v331, %v331
        %v334 = vsel %vm313, %v332, %v306
        %v335 = vlaneseq
        %v336 = vshrl.u32 %v335, 7
        %v337 = vsub.s32 2, %v336
        %v338 = vrot.slane %v281, %v337
        %v340 = vsel %vm313, %v338, %v312
        %vm341 = vcmp.eq.s32.totalorder %v229, 3
        %v342 = vrot.slane %v274, 5
        %v344 = vsub.f32 %v228, %v342
        %v347 = vunpack.c.l.s4 1966171168
        %v348 = vunpack.c.0.s8 %v347
        %v349 = vlaneseq
        %v350 = vshrl.u32 %v349, 7
        %v351 = vsub.s32 %v348, %v350
        %v352 = vrot.slane %v344, %v351
        %v353 = vcombine.high %v352, %v352
        %v355 = vunpack.c.l.s4 1966171168
        %v356 = vunpack.c.0.s8 %v355
        %v357 = vlaneseq
        %v358 = vshrl.u32 %v357, 7
        %v359 = vsub.s32 %v356, %v358
        %v360 = vrot.slane %v353, %v359
        %v361 = vcombine.high %v360, %v360
        %v363 = vsel %vm341, %v361, %v334
        %v364 = vlaneseq
        %v365 = vshrl.u32 %v364, 7
        %v366 = vsub.s32 3, %v365
        %v367 = vrot.slane %v281, %v366
        %v369 = vsel %vm341, %v367, %v340
        %v370 = vmul.f32 %v363, 1.442695
        %v371 = vpow.pop %v370
        %v372 = vsub.f32 1.0, %v371
        %v373 = vmul.f32 %v372, %v372
        %v374 = vsub.f32 0.0, %v369
        %v375 = vmul.f32 %v374, %v373
        %v376 = vmul.f32 %v375, %v363
        %v377 = vld [vmem:[%s216] sm:$0x1]
        %v378 = vadd.f32 %v377, %v376
        %379 = vst [vmem:[%s216] sm:$0x1] %v378
        %s380 = sand.u32 %s117, 1
        %s381 = scalar_lea.sflag [#allocation4], %s380
        %s382 = sand.u32 %s117, 1
        %s383 = smul.addr %s382, 8
        %s384 = scalar_lea.vmem [#allocation5], %s383
        // Predicated region
        $region41: #{tpu_custom_call.1} parent=31 // pred_check
          %p385 = pneg %p127
        $region42: #{tpu_custom_call.1} parent=31 // pred_check_branch
          %387 = sbr.rel (%p385) target = $region44
        $region43: #{tpu_custom_call.1} parent=31 // pred_region
          %s389 = ssub.s32 128, 128
          %390 = vsyncadd %s381, %s389
          %s391 = smul.addr %s24, 128
          %s392 = scalar_lea.hbm %s3, %s391
          %s394 = sshll.u32 %s384, 4
          %s395 = int_to_ptr.vmem [resolvable:$true] %s394
          %397 = dma.vmem_to_hbm [thread:$0]  %s395, 128, %s392, %s381
        $region44: #{tpu_custom_call.1} parent=31 // pred_fallthru
          _
      $region32: #{tpu_custom_call.1} parent=5 // pred_fallthru
        _
      %p398 = scmp.le.s32.totalorder 2, %s15
      // Predicated region
      $region45: #{tpu_custom_call.1} parent=5 // pred_check
        %p399 = pneg %p398
      $region46: #{tpu_custom_call.1} parent=5 // pred_check_branch
        %401 = sbr.rel (%p399) target = $region48
      $region47: #{tpu_custom_call.1} parent=5 // pred_region
        %s402 = ssub.s32 %s15, 2
        // Predicated region
        $region49: #{tpu_custom_call.1} parent=47 // pred_check
          %p403 = pneg %p133
        $region50: #{tpu_custom_call.1} parent=47 // pred_check_branch
          %405 = sbr.rel (%p403) target = $region52
        $region51: #{tpu_custom_call.1} parent=47 // pred_region
          %s406 = sand.u32 %s118, 1
          %s407 = scalar_lea.sflag [#allocation4], %s406
          %s408 = sand.u32 %s118, 1
          %s409 = smul.addr %s408, 8
          %s410 = scalar_lea.vmem [#allocation5], %s409
          %411 = dma.done %s407, 128
        $region52: #{tpu_custom_call.1} parent=47 // pred_fallthru
          _
      $region48: #{tpu_custom_call.1} parent=5 // pred_fallthru
        _
    $region6: #{tpu_custom_call.1} parent=1 // loop_footer
      %s19 = sadd.s32 1, %s15
    $region7: #{tpu_custom_call.1} parent=1 // loop_footer_branch
      %14 = sbr.rel target = $region3
    $region8: #{tpu_custom_call.1} parent=1 // loop_exit
      _
    %412 = vsyncpa [#allocation3], 1
    %s413 = scalar_lea.sflag [#allocation3], 1
    %414 = vsyncpa %s413, 1
    %415 = vsyncpa [#allocation4], 1
    %s416 = scalar_lea.sflag [#allocation4], 1
    %417 = vsyncpa %s416, 1

</llo_original>
